<compile_context>
chip_gen: v7x
topology: tpu7x:2x2x1
jax: 0.10.0
libtpu: 0.0.40
codegen_flags: <defaults>
</compile_context>

<pallas_src>
import functools

import jax
import jax.numpy as jnp
from jax import lax
from jax.experimental import pallas as pl
from jax.experimental.pallas import tpu as pltpu


def _conv_stats_kernel(n_lane_chunks, cols_ref, w_ref, z_ref, s1_ref, s2_ref):
    # cols_ref: (9*Cin, TM)  patches^T (compute dtype)
    # w_ref:    (Cout, 9*Cin) fused conv weight^T (compute dtype)
    # z_ref:    (Cout, TM)  fused-conv output WITHOUT bias, f32
    # s1_ref/s2_ref: (1, Cout, 128) per-tile lane-chunked partial sums, f32
    z = jnp.dot(w_ref[...], cols_ref[...], preferred_element_type=jnp.float32)
    z_ref[...] = z
    # Lane-chunked partial sums (pure VPU adds, no cross-lane work in-kernel;
    # the final 128-lane reduction is a tiny host-side sum).
    ps1 = z[:, 0:128]
    ps2 = ps1 * ps1
    for c in range(1, n_lane_chunks):
        zc = z[:, c * 128:(c + 1) * 128]
        ps1 = ps1 + zc
        ps2 = ps2 + zc * zc
    s1_ref[0] = ps1
    s2_ref[0] = ps2


def _affine_kernel(relu, z_ref, scale_ref, shift_ref, out_ref):
    # z_ref/out_ref: (Cout, TM); scale/shift: (Cout, 1) broadcast over lanes.
    y = z_ref[...] * scale_ref[...] + shift_ref[...]
    if relu:
        y = jnp.maximum(y, 0.0)
    out_ref[...] = y.astype(out_ref.dtype)


def separable_conv2d(x_nchw, w1, b1, w2, b2, gamma, beta, *,
                     bn=True, relu=False, tm=512, compute_dtype=jnp.float32):
    """Forward of SeparableConv2d.

    x_nchw: (N, Cin, H, W) f32.  w1: (3,3,Cin,Cout), b1: (Cout,),
    w2: (Cout, Cout) acting as `y @ w2`, b2/gamma/beta: (Cout,).
    Returns (N, Cout, H+2, W+2) f32.
    """
    N, Cin, H, W = x_nchw.shape
    Cout = w1.shape[-1]
    K = 9 * Cin
    Ho, Wo = H + 2, W + 2
    M = N * H * W
    assert tm % 128 == 0, "tile must be a multiple of the 128-lane width"

    # ---- glue: fused weights + transposed im2col (patches^T, (K, M)) ----
    w1f = w1.reshape(K, Cout)                              # (kh,kw,cin) flattening
    w_eff_t = (w1f @ w2).T.astype(compute_dtype)           # (Cout, K)
    b_eff = (b1 @ w2 + b2).astype(jnp.float32)             # (Cout,)

    xp = jnp.pad(x_nchw, ((0, 0), (0, 0), (1, 1), (1, 1)))              # 'same' pad
    taps = jnp.stack([xp[:, :, kh:kh + H, kw:kw + W]
                      for kh in range(3) for kw in range(3)], axis=0)   # (9,N,Cin,H,W)
    cols_t = jnp.transpose(taps, (0, 2, 1, 3, 4)).reshape(K, M)         # (K, M)

    num_tiles = pl.cdiv(M, tm)
    mp = num_tiles * tm
    if mp != M:
        # zero patch columns -> z_raw is exactly 0 there -> no effect on stats
        cols_t = jnp.pad(cols_t, ((0, 0), (0, mp - M)))
    cols_t = cols_t.astype(compute_dtype)

    # ---- pass 1: fused conv (no bias) + per-tile BN partial sums ----
    n_lane_chunks = tm // 128
    z_raw, s1p, s2p = pl.pallas_call(
        functools.partial(_conv_stats_kernel, n_lane_chunks),
        grid=(num_tiles,),
        in_specs=[pl.BlockSpec((K, tm), lambda i: (0, i)),
                  pl.BlockSpec((Cout, K), lambda i: (0, 0))],
        out_specs=(pl.BlockSpec((Cout, tm), lambda i: (0, i)),
                   pl.BlockSpec((1, Cout, 128), lambda i: (i, 0, 0)),
                   pl.BlockSpec((1, Cout, 128), lambda i: (i, 0, 0))),
        out_shape=(jax.ShapeDtypeStruct((Cout, mp), jnp.float32),
                   jax.ShapeDtypeStruct((num_tiles, Cout, 128), jnp.float32),
                   jax.ShapeDtypeStruct((num_tiles, Cout, 128), jnp.float32)),
        compiler_params=pltpu.CompilerParams(
            dimension_semantics=("parallel",)),
    )(cols_t, w_eff_t)

    # ---- per-channel scale / shift (tiny f32 host math between the passes) ----
    # core z = z_raw + b_eff  (M pixels);  border z = b2 exactly (n_b pixels).
    n_total = float(N * Ho * Wo)
    n_b = float(N * Ho * Wo - M)
    if bn:
        s1 = jnp.sum(s1p, axis=(0, 2))                     # sum z_raw over core
        s2 = jnp.sum(s2p, axis=(0, 2))                     # sum z_raw^2 over core
        d = b2.astype(jnp.float32) - b_eff                 # border offset from center
        mean_c = (s1 + n_b * d) / n_total                  # E[z] - b_eff
        var = (s2 + n_b * d * d) / n_total - mean_c * mean_c   # biased Var(z)
        scale = gamma * lax.rsqrt(var + 1e-5)
        shift2 = beta - mean_c * scale                     # b_eff already folded in
        border_val = beta + (d - mean_c) * scale           # normalized border (=b2)
    else:
        scale = jnp.ones((Cout,), jnp.float32)
        shift2 = b_eff
        border_val = b2.astype(jnp.float32)
    if relu:
        border_val = jnp.maximum(border_val, 0.0)

    # ---- pass 2: apply scale/shift (+ReLU) over the lane-dense core ----
    out_t = pl.pallas_call(
        functools.partial(_affine_kernel, relu),
        grid=(num_tiles,),
        in_specs=[pl.BlockSpec((Cout, tm), lambda i: (0, i)),
                  pl.BlockSpec((Cout, 1), lambda i: (0, 0)),
                  pl.BlockSpec((Cout, 1), lambda i: (0, 0))],
        out_specs=pl.BlockSpec((Cout, tm), lambda i: (0, i)),
        out_shape=jax.ShapeDtypeStruct((Cout, mp), jnp.float32),
        compiler_params=pltpu.CompilerParams(
            dimension_semantics=("parallel",)),
    )(z_raw, scale.reshape(Cout, 1).astype(jnp.float32),
      shift2.reshape(Cout, 1).astype(jnp.float32))

    # ---- glue: assemble padded NCHW output ----
    core = jnp.transpose(out_t[:, :M].reshape(Cout, N, H, W), (1, 0, 2, 3))
    out = jnp.broadcast_to(border_val[None, :, None, None], (N, Cout, Ho, Wo))
    out = out.at[:, :, 1:H + 1, 1:W + 1].set(core)
    return out


def _reference(x_nchw, w1, b1, w2, b2, gamma, beta, *, bn=True, relu=False):
    """Pure-JAX reference (lax.conv) matching the PyTorch forward."""
    w1_oihw = jnp.transpose(w1, (3, 2, 0, 1))
    y = lax.conv_general_dilated(x_nchw, w1_oihw, (1, 1), 'SAME',
                                 dimension_numbers=('NCHW', 'OIHW', 'NCHW'))
    y = y + b1[None, :, None, None]
    w2_oihw = w2.T[:, :, None, None]                       # (Cout, Cin, 1, 1)
    z = lax.conv_general_dilated(y, w2_oihw, (1, 1), [(1, 1), (1, 1)],
                                 dimension_numbers=('NCHW', 'OIHW', 'NCHW'))
    z = z + b2[None, :, None, None]
    if bn:
        mean = z.mean(axis=(0, 2, 3))
        var = z.var(axis=(0, 2, 3))                        # biased
        z = (z - mean[None, :, None, None]) * lax.rsqrt(var + 1e-5)[None, :, None, None]
        z = z * gamma[None, :, None, None] + beta[None, :, None, None]
    if relu:
        z = jnp.maximum(z, 0.0)
    return z


if __name__ == "__main__":
    key = jax.random.PRNGKey(0)
    k_x, k_w1, k_b1, k_w2, k_b2 = jax.random.split(key, 5)

    def make_inputs(N, C, H, W):
        x = jax.random.normal(k_x, (N, C, H, W), dtype=jnp.float32)
        w1 = 0.2 * jax.random.normal(k_w1, (3, 3, C, C), dtype=jnp.float32)
        b1 = 0.1 * jax.random.normal(k_b1, (C,), dtype=jnp.float32)
        w2 = 0.3 * jax.random.normal(k_w2, (C, C), dtype=jnp.float32)
        b2 = 0.1 * jax.random.normal(k_b2, (C,), dtype=jnp.float32)
        gamma = jnp.ones((C,), dtype=jnp.float32)          # BatchNorm2d defaults
        beta = jnp.zeros((C,), dtype=jnp.float32)
        return x, w1, b1, w2, b2, gamma, beta

    configs = [
        # (N, C, H, W),   bn,    relu,  tm,  compute_dtype, tol
        ((2, 4, 16, 16), True,  False, 128, jnp.float32,  1e-3),  # module defaults, 4-step grid
        ((2, 4, 16, 16), True,  False, 256, jnp.bfloat16, 3e-2),  # bf16 MXU inputs, f32 accum
        ((2, 4, 10, 10), True,  True,  128, jnp.float32,  1e-3),  # M-padding path + ReLU
        ((2, 4, 10, 10), False, False, 128, jnp.float32,  1e-3),  # no BatchNorm
    ]
    for (N, C, H, W), bn, relu, tm, cdt, tol in configs:
        args = make_inputs(N, C, H, W)
        out = separable_conv2d(*args, bn=bn, relu=relu, tm=tm, compute_dtype=cdt)
        out = jax.block_until_ready(out)
        ref = _reference(*args, bn=bn, relu=relu)
        assert out.shape == (N, C, H + 2, W + 2), out.shape
        ok = jnp.allclose(out, ref, atol=tol, rtol=tol)
        assert bool(ok), (bn, relu, tm, str(cdt),
                          float(jnp.max(jnp.abs(out - ref))))

    print("KERNEL_OK")
</pallas_src>

<mosaic_0001>
module attributes {stable_mosaic.version = 11 : i64} {
  func.func @_conv_stats_kernel(%arg0: i32, %arg1: memref<36x128xf32, #tpu.memory_space<vmem>>, %arg2: memref<4x36xf32, #tpu.memory_space<vmem>>, %arg3: memref<4x128xf32, #tpu.memory_space<vmem>>, %arg4: memref<1x4x128xf32, #tpu.memory_space<vmem>>, %arg5: memref<1x4x128xf32, #tpu.memory_space<vmem>>) attributes {dimension_semantics = [#tpu.dimension_semantics<parallel>], iteration_bounds = array<i64: 4>, scalar_prefetch = 0 : i64, scratch_operands = 0 : i64, tpu.core_type = #tpu.core_type<tc>, window_params = [{transform_indices = @transform_0, window_bounds = array<i64: 36, 128>}, {pipeline_mode = #tpu.pipeline_mode<synchronous>, transform_indices = @transform_1, window_bounds = array<i64: 4, 36>}, {transform_indices = @transform_2, window_bounds = array<i64: 4, 128>}, {transform_indices = @transform_3, window_bounds = array<i64: 1, 4, 128>}, {transform_indices = @transform_4, window_bounds = array<i64: 1, 4, 128>}]} {
    %c0 = arith.constant 0 : index
    %c0_0 = arith.constant 0 : index
    %0 = vector.load %arg2[%c0, %c0_0] : memref<4x36xf32, #tpu.memory_space<vmem>>, vector<4x36xf32>
    %c0_1 = arith.constant 0 : index
    %c0_2 = arith.constant 0 : index
    %1 = vector.load %arg1[%c0_1, %c0_2] : memref<36x128xf32, #tpu.memory_space<vmem>>, vector<36x128xf32>
    %cst = arith.constant dense<0.000000e+00> : vector<4x128xf32>
    %2 = tpu.matmul %0, %1, %cst {dimension_numbers = #tpu.dot_dimension_numbers<[1], [0], [0], [1], [0, 0, 1, 1], [], []>} : vector<4x36xf32>, vector<36x128xf32>, vector<4x128xf32> -> vector<4x128xf32>
    %c0_3 = arith.constant 0 : index
    %c0_4 = arith.constant 0 : index
    %3 = vector.load %arg3[%c0_3, %c0_4] : memref<4x128xf32, #tpu.memory_space<vmem>>, vector<4x128xf32>
    tpu.vector_store %arg3[%c0_3, %c0_4], %2 {strides = array<i32>} : memref<4x128xf32, #tpu.memory_space<vmem>>, vector<4x128xf32>,
    %4 = arith.mulf %2, %2 : vector<4x128xf32>
    %c0_5 = arith.constant 0 : index
    %c0_6 = arith.constant 0 : index
    %c0_7 = arith.constant 0 : index
    %5 = vector.load %arg4[%c0_5, %c0_6, %c0_7] : memref<1x4x128xf32, #tpu.memory_space<vmem>>, vector<1x4x128xf32>
    %6 = vector.shape_cast %5 : vector<1x4x128xf32> to vector<4x128xf32>
    %7 = vector.shape_cast %2 : vector<4x128xf32> to vector<1x4x128xf32>
    tpu.vector_store %arg4[%c0_5, %c0_6, %c0_7], %7 {strides = array<i32>} : memref<1x4x128xf32, #tpu.memory_space<vmem>>, vector<1x4x128xf32>,
    %c0_8 = arith.constant 0 : index
    %c0_9 = arith.constant 0 : index
    %c0_10 = arith.constant 0 : index
    %8 = vector.load %arg5[%c0_8, %c0_9, %c0_10] : memref<1x4x128xf32, #tpu.memory_space<vmem>>, vector<1x4x128xf32>
    %9 = vector.shape_cast %8 : vector<1x4x128xf32> to vector<4x128xf32>
    %10 = vector.shape_cast %4 : vector<4x128xf32> to vector<1x4x128xf32>
    tpu.vector_store %arg5[%c0_8, %c0_9, %c0_10], %10 {strides = array<i32>} : memref<1x4x128xf32, #tpu.memory_space<vmem>>, vector<1x4x128xf32>,
    return
  }
  func.func @transform_0(%arg0: i32) -> (i32, i32) {
    %c0_i32 = arith.constant 0 : i32
    %c0_i32_0 = arith.constant 0 : i32
    return %c0_i32, %arg0 : i32, i32
  }
  func.func @transform_1(%arg0: i32) -> (i32, i32) {
    %c0_i32 = arith.constant 0 : i32
    %c0_i32_0 = arith.constant 0 : i32
    %c0_i32_1 = arith.constant 0 : i32
    return %c0_i32, %c0_i32_0 : i32, i32
  }
  func.func @transform_2(%arg0: i32) -> (i32, i32) {
    %c0_i32 = arith.constant 0 : i32
    %c0_i32_0 = arith.constant 0 : i32
    return %c0_i32, %arg0 : i32, i32
  }
  func.func @transform_3(%arg0: i32) -> (i32, i32, i32) {
    %c0_i32 = arith.constant 0 : i32
    %c0_i32_0 = arith.constant 0 : i32
    %c0_i32_1 = arith.constant 0 : i32
    return %arg0, %c0_i32, %c0_i32_0 : i32, i32, i32
  }
  func.func @transform_4(%arg0: i32) -> (i32, i32, i32) {
    %c0_i32 = arith.constant 0 : i32
    %c0_i32_0 = arith.constant 0 : i32
    %c0_i32_1 = arith.constant 0 : i32
    return %arg0, %c0_i32, %c0_i32_0 : i32, i32, i32
  }
}

</mosaic_0001>

<llo_original>
// kernel: tpu_custom_call.1
$region0: #{tpu_custom_call.1}
  #allocation0 [shape = 'u32[]', space=smem, size = 0x4, offset = 0x4, fixed_abs, tag = 'smem constant byte address 0x4 - core index']
  #allocation1 [shape = 'u32[144,128]{1,0:T(1,128)}', space=vmem, size = 0x12000, scoped, tag = 'internal scratch']
  %s0 = inlined_call_operand.hbm [shape: f32[36,512], index: 0, kind: input, shape index: {}]
  %s1 = inlined_call_operand.hbm [shape: f32[4,36], index: 1, kind: input, shape index: {}]
  %s2 = inlined_call_operand.hbm [shape: f32[4,512], index: 2, kind: output, shape index: {0}]
  %s3 = inlined_call_operand.hbm [shape: f32[4,4,128], index: 3, kind: output, shape index: {1}]
  %s4 = inlined_call_operand.hbm [shape: f32[4,4,128], index: 4, kind: output, shape index: {2}]
  %5 = xla_tuple %s2, %s3, %s4
  %s6 = sld [smem:[#allocation0]]
  $region65: #{tpu_custom_call.1} parent=0
    _
  %s8 = ssub.s32 1, %s6
  %s9 = scalar_select 0, %s8, %s6
  $region1: #{tpu_custom_call.1} parent=0
    #allocation2 [shape = 'u8[40960]{0}', space=vmem, size = 0xa000, scoped, tag = 'input window, operand 0']
    #allocation3 [shape = 's32[2]{0}', space=sflag, size = 0x8, scoped, tag = 'scoped memory for tpu_custom_call.1']
    #allocation4 [shape = 's32[2]{0}', space=sflag, size = 0x8, scoped, tag = 'scoped memory for tpu_custom_call.1']
    #allocation5 [shape = 'u8[2048]{0}', space=vmem, size = 0x800, scoped, tag = 'input window, operand 1, single buffered']
    #allocation6 [shape = 's32[1]{0}', space=sflag, size = 0x4, scoped, tag = 'scoped memory for tpu_custom_call.1']
    #allocation7 [shape = 'u8[4096]{0}', space=vmem, size = 0x1000, scoped, tag = 'output window, operand 0']
    #allocation8 [shape = 'u8[4096]{0}', space=vmem, size = 0x1000, scoped, tag = 'output window, operand 1']
    #allocation9 [shape = 's32[2]{0}', space=sflag, size = 0x8, scoped, tag = 'scoped memory for tpu_custom_call.1']
    #allocation10 [shape = 'u8[4096]{0}', space=vmem, size = 0x1000, scoped, tag = 'output window, operand 2']
    %10 = vsyncpa [#allocation3], 0
    %s11 = scalar_lea.sflag [#allocation3], 1
    %12 = vsyncpa %s11, 0
    %13 = vsyncpa [#allocation6], 0
    %14 = vsyncpa [#allocation4], 0
    %s15 = scalar_lea.sflag [#allocation4], 1
    %16 = vsyncpa %s15, 0
    %17 = vsyncpa [#allocation9], 0
    %s18 = scalar_lea.sflag [#allocation9], 1
    %19 = vsyncpa %s18, 0
    loop: start=0, step=1, limit=6
    $region2: #{tpu_custom_call.1} parent=1 // loop_pre_header
      _
    $region3: #{tpu_custom_call.1} parent=1 // loop_header
      %s21 = sphi 0, %s25
      %p22 = scmp.ge.s32.totalorder %s21, 6
      %s31 = sphi 0, %s33
      %s34 = sphi 0, %s31
      %s35 = sphi 0, %s34
      %s51 = sphi 0, %s35
      %s55 = sphi 0, %s55
      %s57 = sphi 0, %s55
      %s58 = sphi 0, %s57
      %s72 = sphi 0, %s58
      %s78 = sphi 0, %s80
      %s81 = sphi 0, %s78
      %s82 = sphi 0, %s81
      %s98 = sphi 0, %s82
      %s104 = sphi 0, %s106
      %s107 = sphi 0, %s104
      %s108 = sphi 0, %s107
      %s124 = sphi 0, %s108
      %s130 = sphi 0, %s132
      %s133 = sphi 0, %s130
      %s134 = sphi 0, %s133
      %s150 = sphi 0, %s134
    $region4: #{tpu_custom_call.1} parent=1 // loop_header_branch
      %24 = sbr.rel (%p22) target = $region8
    $region5: #{tpu_custom_call.1} parent=1 // loop_body
      %s26 = ssub.s32 %s21, 1
      %s27 = ssub.s32 %s21, 2
      %s28 = sadd.s32 %s21, 1
      %s29 = ssub.s32 %s21, %s28
      %p30 = scmp.eq.s32.totalorder %s29, 0
      %s32 = sadd.s32 %s31, 1
      %s33 = scalar_select %p30, %s31, %s32
      %p36 = pneg %p30
      %p37 = scmp.eq.s32.totalorder %s21, 3
      %p38 = por %p36, %p37
      %p39 = scmp.ne.s32.totalorder %s31, %s34
      %p40 = scmp.eq.s32.totalorder %s21, 0
      %p41 = por %p39, %p40
      %p42 = scmp.ne.s32.totalorder %s31, %s34
      %p43 = scmp.eq.s32.totalorder %s26, 3
      %p44 = por %p42, %p43
      %p45 = scmp.ne.s32.totalorder %s34, %s35
      %p46 = scmp.eq.s32.totalorder %s26, 0
      %p47 = por %p45, %p46
      %p48 = scmp.ne.s32.totalorder %s34, %s35
      %p49 = scmp.eq.s32.totalorder %s27, 3
      %p50 = por %p48, %p49
      %p52 = scmp.ne.s32.totalorder %s35, %s51
      %p53 = scmp.eq.s32.totalorder %s27, 0
      %p54 = por %p52, %p53
      %s56 = sadd.s32 %s55, 1
      %p59 = scmp.eq.s32.totalorder %s21, 3
      %p60 = scmp.ne.s32.totalorder %s55, %s57
      %p61 = scmp.eq.s32.totalorder %s21, 0
      %p62 = por %p60, %p61
      %p63 = scmp.ne.s32.totalorder %s55, %s57
      %p64 = scmp.eq.s32.totalorder %s26, 3
      %p65 = por %p63, %p64
      %p66 = scmp.ne.s32.totalorder %s57, %s58
      %p67 = scmp.eq.s32.totalorder %s26, 0
      %p68 = por %p66, %p67
      %p69 = scmp.ne.s32.totalorder %s57, %s58
      %p70 = scmp.eq.s32.totalorder %s27, 3
      %p71 = por %p69, %p70
      %p73 = scmp.ne.s32.totalorder %s58, %s72
      %p74 = scmp.eq.s32.totalorder %s27, 0
      %p75 = por %p73, %p74
      %s76 = ssub.s32 %s21, %s28
      %p77 = scmp.eq.s32.totalorder %s76, 0
      %s79 = sadd.s32 %s78, 1
      %s80 = scalar_select %p77, %s78, %s79
      %p83 = pneg %p77
      %p84 = scmp.eq.s32.totalorder %s21, 3
      %p85 = por %p83, %p84
      %p86 = scmp.ne.s32.totalorder %s78, %s81
      %p87 = scmp.eq.s32.totalorder %s21, 0
      %p88 = por %p86, %p87
      %p89 = scmp.ne.s32.totalorder %s78, %s81
      %p90 = scmp.eq.s32.totalorder %s26, 3
      %p91 = por %p89, %p90
      %p92 = scmp.ne.s32.totalorder %s81, %s82
      %p93 = scmp.eq.s32.totalorder %s26, 0
      %p94 = por %p92, %p93
      %p95 = scmp.ne.s32.totalorder %s81, %s82
      %p96 = scmp.eq.s32.totalorder %s27, 3
      %p97 = por %p95, %p96
      %p99 = scmp.ne.s32.totalorder %s82, %s98
      %p100 = scmp.eq.s32.totalorder %s27, 0
      %p101 = por %p99, %p100
      %s102 = ssub.s32 %s21, %s28
      %p103 = scmp.eq.s32.totalorder %s102, 0
      %s105 = sadd.s32 %s104, 1
      %s106 = scalar_select %p103, %s104, %s105
      %p109 = pneg %p103
      %p110 = scmp.eq.s32.totalorder %s21, 3
      %p111 = por %p109, %p110
      %p112 = scmp.ne.s32.totalorder %s104, %s107
      %p113 = scmp.eq.s32.totalorder %s21, 0
      %p114 = por %p112, %p113
      %p115 = scmp.ne.s32.totalorder %s104, %s107
      %p116 = scmp.eq.s32.totalorder %s26, 3
      %p117 = por %p115, %p116
      %p118 = scmp.ne.s32.totalorder %s107, %s108
      %p119 = scmp.eq.s32.totalorder %s26, 0
      %p120 = por %p118, %p119
      %p121 = scmp.ne.s32.totalorder %s107, %s108
      %p122 = scmp.eq.s32.totalorder %s27, 3
      %p123 = por %p121, %p122
      %p125 = scmp.ne.s32.totalorder %s108, %s124
      %p126 = scmp.eq.s32.totalorder %s27, 0
      %p127 = por %p125, %p126
      %s128 = ssub.s32 %s21, %s28
      %p129 = scmp.eq.s32.totalorder %s128, 0
      %s131 = sadd.s32 %s130, 1
      %s132 = scalar_select %p129, %s130, %s131
      %p135 = pneg %p129
      %p136 = scmp.eq.s32.totalorder %s21, 3
      %p137 = por %p135, %p136
      %p138 = scmp.ne.s32.totalorder %s130, %s133
      %p139 = scmp.eq.s32.totalorder %s21, 0
      %p140 = por %p138, %p139
      %p141 = scmp.ne.s32.totalorder %s130, %s133
      %p142 = scmp.eq.s32.totalorder %s26, 3
      %p143 = por %p141, %p142
      %p144 = scmp.ne.s32.totalorder %s133, %s134
      %p145 = scmp.eq.s32.totalorder %s26, 0
      %p146 = por %p144, %p145
      %p147 = scmp.ne.s32.totalorder %s133, %s134
      %p148 = scmp.eq.s32.totalorder %s27, 3
      %p149 = por %p147, %p148
      %p151 = scmp.ne.s32.totalorder %s134, %s150
      %p152 = scmp.eq.s32.totalorder %s27, 0
      %p153 = por %p151, %p152
      %p154 = scmp.le.s32.totalorder 1, %s21
      %p155 = scmp.lt.s32.totalorder %s21, 5
      %p156 = pnand %p154, %p155
      %p157 = pneg %p156
      // Predicated region
      $region9: #{tpu_custom_call.1} parent=5 // pred_check
        _
      $region10: #{tpu_custom_call.1} parent=5 // pred_check_branch
        %159 = sbr.rel (%p156) target = $region12
      $region11: #{tpu_custom_call.1} parent=5 // pred_region
        %s160 = ssub.s32 %s21, 1
        // Predicated region
        $region13: #{tpu_custom_call.1} parent=11 // pred_check
          %p161 = pneg %p68
        $region14: #{tpu_custom_call.1} parent=11 // pred_check_branch
          %163 = sbr.rel (%p161) target = $region16
        $region15: #{tpu_custom_call.1} parent=11 // pred_region
          %s165 = ssub.s32 64, 64
          %166 = vsyncadd [#allocation6], %s165
          %s168 = sshll.u32 [#allocation5], 4
          %s169 = int_to_ptr.vmem [resolvable:$true] %s168
          %171 = dma.hbm_to_vmem [thread:$0]  %s1, 64, %s169, [#allocation6]
        $region16: #{tpu_custom_call.1} parent=11 // pred_fallthru
          _
      $region12: #{tpu_custom_call.1} parent=5 // pred_fallthru
        _
      %p172 = scmp.lt.s32.totalorder %s21, 4
      // Predicated region
      $region17: #{tpu_custom_call.1} parent=5 // pred_check
        %p173 = pneg %p172
      $region18: #{tpu_custom_call.1} parent=5 // pred_check_branch
        %175 = sbr.rel (%p173) target = $region20
      $region19: #{tpu_custom_call.1} parent=5 // pred_region
        // Predicated region
        $region21: #{tpu_custom_call.1} parent=19 // pred_check
          %p176 = pneg %p41
        $region22: #{tpu_custom_call.1} parent=19 // pred_check_branch
          %178 = sbr.rel (%p176) target = $region24
        $region23: #{tpu_custom_call.1} parent=19 // pred_region
          %s179 = sand.u32 %s31, 1
          %s180 = scalar_lea.sflag [#allocation3], %s179
          %s181 = sand.u32 %s31, 1
          %s182 = smul.addr %s181, 40
          %s183 = scalar_lea.vmem [#allocation2], %s182
          %s185 = ssub.s32 640, 640
          %186 = vsyncadd %s180, %s185
          %s187 = smul.addr %s21, 128
          %s188 = scalar_lea.hbm %s0, %s187
          %s189 = sshll.u32 %s183, 4
          %s190 = int_to_ptr.vmem [resolvable:$true] %s189
          %195 = dma.hbm_to_vmem [thread:$0]  %s188, 640, %s190, %s180, 512, 128, 8
        $region24: #{tpu_custom_call.1} parent=19 // pred_fallthru
          _
      $region20: #{tpu_custom_call.1} parent=5 // pred_fallthru
        _
      %p196 = scmp.le.s32.totalorder 1, %s21
      %p197 = scmp.lt.s32.totalorder %s21, 5
      %p198 = pnand %p196, %p197
      %p199 = pneg %p198
      // Predicated region
      $region25: #{tpu_custom_call.1} parent=5 // pred_check
        _
      $region26: #{tpu_custom_call.1} parent=5 // pred_check_branch
        %201 = sbr.rel (%p198) target = $region28
      $region27: #{tpu_custom_call.1} parent=5 // pred_region
        %s202 = ssub.s32 %s21, 1
        %s203 = sand.u32 %s34, 1
        %s204 = scalar_lea.sflag [#allocation3], %s203
        %s205 = sand.u32 %s34, 1
        %s206 = smul.addr %s205, 40
        %s207 = scalar_lea.vmem [#allocation2], %s206
        // Predicated region
        $region29: #{tpu_custom_call.1} parent=27 // pred_check
          %p208 = pneg %p47
        $region30: #{tpu_custom_call.1} parent=27 // pred_check_branch
          %210 = sbr.rel (%p208) target = $region32
        $region31: #{tpu_custom_call.1} parent=27 // pred_region
          %211 = dma.done %s204, 640
        $region32: #{tpu_custom_call.1} parent=27 // pred_fallthru
          _
        // Predicated region
        $region33: #{tpu_custom_call.1} parent=27 // pred_check
          %p212 = pneg %p68
        $region34: #{tpu_custom_call.1} parent=27 // pred_check_branch
          %214 = sbr.rel (%p212) target = $region36
        $region35: #{tpu_custom_call.1} parent=27 // pred_region
          %215 = dma.done [#allocation6], 64
        $region36: #{tpu_custom_call.1} parent=27 // pred_fallthru
          _
        %s216 = sand.u32 %s34, 1
        %s217 = scalar_lea.sflag [#allocation3], %s216
        %s218 = sand.u32 %s34, 1
        %s219 = smul.addr %s218, 40
        %s220 = scalar_lea.vmem [#allocation2], %s219
        %p221 = pneg %p47
        %p222 = pneg %p44
        %p223 = pneg %p68
        %p224 = pneg %p65
        %p225 = pneg %p94
        %p226 = pneg %p91
        %s227 = sand.u32 %s81, 1
        %s228 = scalar_lea.sflag [#allocation4], %s227
        %s229 = sand.u32 %s81, 1
        %s230 = smul.addr %s229, 4
        %s231 = scalar_lea.vmem [#allocation7], %s230
        %p232 = pneg %p120
        %p233 = pneg %p117
        %s234 = sand.u32 %s26, 1
        %s235 = scalar_lea.sflag [#allocation9], %s234
        %s236 = sand.u32 %s107, 1
        %s237 = smul.addr %s236, 4
        %s238 = scalar_lea.vmem [#allocation8], %s237
        %p239 = pneg %p146
        %p240 = pneg %p143
        %s241 = sand.u32 %s26, 1
        %s242 = scalar_lea.sflag [#allocation9], %s241
        %s243 = sand.u32 %s133, 1
        %s244 = smul.addr %s243, 4
        %s245 = scalar_lea.vmem [#allocation10], %s244
        %v246 = vld [vmem:[#allocation5] sm:$0xf]
        %v247 = vld [vmem:[%s207] sm:$0xff]
        %v248 = vld [vmem:[%s207 + $0x8] sm:$0xff]
        %v249 = vld [vmem:[%s207 + $0x10] sm:$0xff]
        %v250 = vld [vmem:[%s207 + $0x18] sm:$0xff]
        %v251 = vld [vmem:[%s207 + $0x20] sm:$0xf]
        %vm252 = vcmask 293888
        %v254 = vsel %vm252, %v246, 0
        %vm256 = vcmask 1043456
        %v258 = vsel %vm256, %v251, 0
        %260 = vmatprep.subr.mxu0 0.0
        %261 = vmatpush1.msra.mxu0 %v247
        %262 = vmatprep.subr.mxu0 0.0
        %263 = vmatpush1.msra.mxu0 %v248
        %264 = vmatprep.subr.mxu0 0.0
        %265 = vmatpush1.msra.mxu0 %v249
        %266 = vmatprep.subr.mxu0 0.0
        %267 = vmatpush1.msra.mxu0 %v250
        %268 = vmatprep.subr.mxu0 0.0
        %269 = vmatpush1.msra.mxu0 %v258
        %270 = vmatprep.subr.mxu0 0.0
        %271 = vmatpush1.msra.mxu0 0.0
        %272 = vmatprep.subr.mxu0 0.0
        %273 = vmatpush1.msra.mxu0 0.0
        %274 = vmatprep.subr.mxu0 0.0
        %275 = vmatpush1.msra.mxu0 0.0
        %276 = vmatprep.subr.mxu0 0.0
        %277 = vmatpush1.msra.mxu0 0.0
        %278 = vmatprep.subr.mxu0 0.0
        %279 = vmatpush1.msra.mxu0 0.0
        %280 = vmatprep.subr.mxu0 0.0
        %281 = vmatpush1.msra.mxu0 0.0
        %282 = vmatprep.subr.mxu0 0.0
        %283 = vmatpush1.msra.mxu0 0.0
        %284 = vmatprep.subr.mxu0 0.0
        %285 = vmatpush1.msra.mxu0 0.0
        %286 = vmatprep.subr.mxu0 0.0
        %287 = vmatpush1.msra.mxu0 0.0
        %288 = vmatprep.subr.mxu0 0.0
        %289 = vmatpush1.msra.mxu0 0.0
        %290 = vmatprep.subr.mxu0 0.0
        %291 = vmatpush1.msra.mxu0 0.0
        %292 = vmatprep.subr.mxu0 0.0
        %293 = vmatpush1.msra.mxu0 0.0
        %294 = vmatprep.subr.mxu0 0.0
        %295 = vmatpush1.msra.mxu0 0.0
        %296 = vmatprep.subr.mxu0 0.0
        %297 = vmatpush1.msra.mxu0 0.0
        %298 = vmatprep.subr.mxu0 0.0
        %299 = vmatpush1.msra.mxu0 0.0
        %300 = vmatprep.subr.mxu0 0.0
        %301 = vmatpush1.msra.mxu0 0.0
        %302 = vmatprep.subr.mxu0 0.0
        %303 = vmatpush1.msra.mxu0 0.0
        %304 = vmatprep.subr.mxu0 0.0
        %305 = vmatpush1.msra.mxu0 0.0
        %306 = vmatprep.subr.mxu0 0.0
        %307 = vmatpush1.msra.mxu0 0.0
        %308 = vmatprep.subr.mxu0 0.0
        %309 = vmatpush1.msra.mxu0 0.0
        %310 = vmatprep.subr.mxu0 0.0
        %311 = vmatpush1.msra.mxu0 0.0
        %312 = vmatprep.subr.mxu0 0.0
        %313 = vmatpush1.msra.mxu0 0.0
        %314 = vmatprep.subr.mxu0 0.0
        %315 = vmatpush1.msra.mxu0 0.0
        %316 = vmatprep.subr.mxu0 0.0
        %317 = vmatpush1.msra.mxu0 0.0
        %318 = vmatprep.subr.mxu0 0.0
        %319 = vmatpush1.msra.mxu0 0.0
        %320 = vmatprep.subr.mxu0 0.0
        %321 = vmatpush1.msra.mxu0 0.0
        %322 = vmatprep.subr.mxu0 0.0
        %323 = vmatpush1.msra.mxu0 0.0
        %324 = vmatprep.mubr.f32.mxu0 0.0
        %325 = vmatmul.mubr.f32.gmra.mrb[0].mxu0 %v254
        %v326 = vpop.f32.mrb[0].mxu0
        %v327 = vadd.f32 0.0, %v326
        %v328 = vpop.f32.mrb[0].mxu0
        %329 = vdwg.mxu0
        %330 = vst [vmem:[%s231] sm:$0xf] %v327
        %v331 = vmul.f32 %v327, %v327
        %332 = vst [vmem:[%s238] sm:$0xf] %v327
        %333 = vst [vmem:[%s245] sm:$0xf] %v331
        %s334 = sand.u32 %s81, 1
        %s335 = scalar_lea.sflag [#allocation4], %s334
        %s336 = sand.u32 %s81, 1
        %s337 = smul.addr %s336, 4
        %s338 = scalar_lea.vmem [#allocation7], %s337
        %s339 = sand.u32 %s26, 1
        %s340 = scalar_lea.sflag [#allocation9], %s339
        %s341 = sand.u32 %s107, 1
        %s342 = smul.addr %s341, 4
        %s343 = scalar_lea.vmem [#allocation8], %s342
        %s344 = sand.u32 %s26, 1
        %s345 = scalar_lea.sflag [#allocation9], %s344
        %s346 = sand.u32 %s133, 1
        %s347 = smul.addr %s346, 4
        %s348 = scalar_lea.vmem [#allocation10], %s347
        // Predicated region
        $region37: #{tpu_custom_call.1} parent=27 // pred_check
          %p349 = pneg %p91
        $region38: #{tpu_custom_call.1} parent=27 // pred_check_branch
          %351 = sbr.rel (%p349) target = $region40
        $region39: #{tpu_custom_call.1} parent=27 // pred_region
          %s353 = ssub.s32 64, 64
          %354 = vsyncadd %s335, %s353
          %s355 = smul.addr %s26, 64
          %s356 = scalar_lea.hbm %s2, %s355
          %s358 = sshll.u32 %s338, 4
          %s359 = int_to_ptr.vmem [resolvable:$true] %s358
          %361 = dma.vmem_to_hbm [thread:$0]  %s359, 64, %s356, %s335
        $region40: #{tpu_custom_call.1} parent=27 // pred_fallthru
          _
        // Predicated region
        $region41: #{tpu_custom_call.1} parent=27 // pred_check
          %p362 = pneg %p117
        $region42: #{tpu_custom_call.1} parent=27 // pred_check_branch
          %364 = sbr.rel (%p362) target = $region44
        $region43: #{tpu_custom_call.1} parent=27 // pred_region
          %s366 = ssub.s32 64, 64
          %367 = vsyncadd %s340, %s366
          %s368 = smul.addr %s26, 64
          %s369 = scalar_lea.hbm %s3, %s368
          %s371 = sshll.u32 %s343, 4
          %s372 = int_to_ptr.vmem [resolvable:$true] %s371
          %374 = dma.vmem_to_hbm [thread:$0]  %s372, 64, %s369, %s340
        $region44: #{tpu_custom_call.1} parent=27 // pred_fallthru
          _
        // Predicated region
        $region45: #{tpu_custom_call.1} parent=27 // pred_check
          %p375 = pneg %p143
        $region46: #{tpu_custom_call.1} parent=27 // pred_check_branch
          %377 = sbr.rel (%p375) target = $region48
        $region47: #{tpu_custom_call.1} parent=27 // pred_region
          %s379 = ssub.s32 64, 64
          %380 = vsyncadd %s345, %s379
          %s381 = smul.addr %s26, 64
          %s382 = scalar_lea.hbm %s4, %s381
          %s384 = sshll.u32 %s348, 4
          %s385 = int_to_ptr.vmem [resolvable:$true] %s384
          %387 = dma.vmem_to_hbm [thread:$0]  %s385, 64, %s382, %s345
        $region48: #{tpu_custom_call.1} parent=27 // pred_fallthru
          _
      $region28: #{tpu_custom_call.1} parent=5 // pred_fallthru
        _
      %p388 = scmp.le.s32.totalorder 2, %s21
      // Predicated region
      $region49: #{tpu_custom_call.1} parent=5 // pred_check
        %p389 = pneg %p388
      $region50: #{tpu_custom_call.1} parent=5 // pred_check_branch
        %391 = sbr.rel (%p389) target = $region52
      $region51: #{tpu_custom_call.1} parent=5 // pred_region
        %s392 = ssub.s32 %s21, 2
        // Predicated region
        $region53: #{tpu_custom_call.1} parent=51 // pred_check
          %p393 = pneg %p97
        $region54: #{tpu_custom_call.1} parent=51 // pred_check_branch
          %395 = sbr.rel (%p393) target = $region56
        $region55: #{tpu_custom_call.1} parent=51 // pred_region
          %s396 = sand.u32 %s82, 1
          %s397 = scalar_lea.sflag [#allocation4], %s396
          %s398 = sand.u32 %s82, 1
          %s399 = smul.addr %s398, 4
          %s400 = scalar_lea.vmem [#allocation7], %s399
          %401 = dma.done %s397, 64
        $region56: #{tpu_custom_call.1} parent=51 // pred_fallthru
          _
        // Predicated region
        $region57: #{tpu_custom_call.1} parent=51 // pred_check
          %p402 = pneg %p123
        $region58: #{tpu_custom_call.1} parent=51 // pred_check_branch
          %404 = sbr.rel (%p402) target = $region60
        $region59: #{tpu_custom_call.1} parent=51 // pred_region
          %s405 = sand.u32 %s27, 1
          %s406 = scalar_lea.sflag [#allocation9], %s405
          %s407 = sand.u32 %s108, 1
          %s408 = smul.addr %s407, 4
          %s409 = scalar_lea.vmem [#allocation8], %s408
          %410 = dma.done %s406, 64
        $region60: #{tpu_custom_call.1} parent=51 // pred_fallthru
          _
        // Predicated region
        $region61: #{tpu_custom_call.1} parent=51 // pred_check
          %p411 = pneg %p149
        $region62: #{tpu_custom_call.1} parent=51 // pred_check_branch
          %413 = sbr.rel (%p411) target = $region64
        $region63: #{tpu_custom_call.1} parent=51 // pred_region
          %s414 = sand.u32 %s27, 1
          %s415 = scalar_lea.sflag [#allocation9], %s414
          %s416 = sand.u32 %s134, 1
          %s417 = smul.addr %s416, 4
          %s418 = scalar_lea.vmem [#allocation10], %s417
          %419 = dma.done %s415, 64
        $region64: #{tpu_custom_call.1} parent=51 // pred_fallthru
          _
      $region52: #{tpu_custom_call.1} parent=5 // pred_fallthru
        _
    $region6: #{tpu_custom_call.1} parent=1 // loop_footer
      %s25 = sadd.s32 1, %s21
    $region7: #{tpu_custom_call.1} parent=1 // loop_footer_branch
      %20 = sbr.rel target = $region3
    $region8: #{tpu_custom_call.1} parent=1 // loop_exit
      _
    %420 = vsyncpa [#allocation3], 1
    %s421 = scalar_lea.sflag [#allocation3], 1
    %422 = vsyncpa %s421, 1
    %423 = vsyncpa [#allocation6], 1
    %424 = vsyncpa [#allocation4], 1
    %s425 = scalar_lea.sflag [#allocation4], 1
    %426 = vsyncpa %s425, 1
    %427 = vsyncpa [#allocation9], 1
    %s428 = scalar_lea.sflag [#allocation9], 1
    %429 = vsyncpa %s428, 1

</llo_original>
